<compile_context>
chip_gen: v6e
topology: v6e:2x2x1
jax: 0.10.0
libtpu: 0.0.40
codegen_flags: <defaults>
</compile_context>

<pallas_src>
import functools

import jax
import jax.numpy as jnp
from jax.experimental import pallas as pl
from jax.experimental.pallas import tpu as pltpu


# -----------------------------------------------------------------------------
# Kernels
# -----------------------------------------------------------------------------

def _calayer_fused_kernel(x_ref, w1t_ref, b1_ref, w2t_ref, b2_ref, o_ref, *,
                          inv_hw):
    """Single-pass CALayer on a block of Nb batch elements.

    x_ref  : (Nb, C, HWp)  activations, channels on sublanes, spatial on lanes
    w1t_ref: (C, Cr)       squeeze 1x1-conv weight (transposed)
    b1_ref : (1, Cr)
    w2t_ref: (Cr, C)       excite 1x1-conv weight (transposed)
    b2_ref : (1, C)
    o_ref  : (Nb, C, HWp)
    """
    # Global average pool over the lane (spatial) axis. Padded lanes are zero,
    # so sum * 1/true_HW is exact. Accumulate in f32.
    pool = jnp.sum(x_ref[...].astype(jnp.float32), axis=-1) * inv_hw      # (Nb, C)

    # Squeeze 1x1 conv (+bias, ReLU): (Nb, C) @ (C, Cr).
    h = jnp.dot(pool, w1t_ref[...], preferred_element_type=jnp.float32)
    h = jnp.maximum(h + b1_ref[...], 0.0)                                 # (Nb, Cr)

    # Excite 1x1 conv (+bias, sigmoid): (Nb, Cr) @ (Cr, C).
    g = jnp.dot(h, w2t_ref[...], preferred_element_type=jnp.float32)
    g = 1.0 / (1.0 + jnp.exp(-(g + b2_ref[...])))                         # (Nb, C)

    # Channel-wise gate. Re-read the ref (VMEM reloads are cheap) and multiply
    # in the output dtype so the store path stays narrow for bf16 inputs.
    o_ref[...] = x_ref[...] * g.astype(o_ref.dtype)[:, :, None]


def _pool_excite_kernel(x_ref, w1_ref, b1_ref, w2_ref, b2_ref, g_ref, acc_ref,
                        *, inv_hw):
    """Two-phase path, phase A: accumulate the pool over HW tiles, then run
    squeeze/excite/sigmoid once per batch element.

    x_ref : (1, C, T)   one HW tile
    w1_ref: (Cr, C)  b1_ref: (Cr, 1)  w2_ref: (C, Cr)  b2_ref: (C, 1)
    g_ref : (1, C, 1)   per-channel gate (float32), output-resident over tiles
    acc_ref: (C, 1)     float32 VMEM accumulator
    """
    t = pl.program_id(1)

    @pl.when(t == 0)
    def _init():
        acc_ref[...] = jnp.zeros_like(acc_ref)

    acc_ref[...] += jnp.sum(x_ref[0].astype(jnp.float32), axis=-1,
                            keepdims=True)                                 # (C, 1)

    @pl.when(t == pl.num_programs(1) - 1)
    def _finish():
        pool = acc_ref[...] * inv_hw                                       # (C, 1)
        h = jnp.dot(w1_ref[...], pool, preferred_element_type=jnp.float32)
        h = jnp.maximum(h + b1_ref[...], 0.0)                              # (Cr, 1)
        g = jnp.dot(w2_ref[...], h, preferred_element_type=jnp.float32)
        g_ref[0] = 1.0 / (1.0 + jnp.exp(-(g + b2_ref[...])))               # (C, 1)


def _apply_gate_kernel(x_ref, g_ref, o_ref):
    """Two-phase path, phase B: out = x * gate, tile by tile."""
    o_ref[...] = x_ref[...] * g_ref[...].astype(o_ref.dtype)


# -----------------------------------------------------------------------------
# Wrapper
# -----------------------------------------------------------------------------

def _vmem_capacity_bytes():
    try:
        return int(pltpu.get_tpu_info().vmem_capacity_bytes)
    except Exception:
        return 64 << 20   # conservative: smallest per-core VMEM (v7x)


def calayer_forward(x_nchw, w1, b1, w2, b2, *, force_two_phase=False,
                    tile_hw_override=None):
    """CALayer forward.

    x_nchw: (N, C, H, W); w1: (C//8, C); b1: (C//8,); w2: (C, C//8); b2: (C,).
    """
    N, C, H, W = x_nchw.shape
    Cr = w1.shape[0]
    HW = H * W
    dtype = x_nchw.dtype
    itemsize = jnp.dtype(dtype).itemsize

    # Lane-dense layout: spatial on the lane axis (pure reshape of NCHW), padded
    # to a multiple of 128 so stores are unmasked vst. The true HW is used for
    # the mean, so the zero padding does not bias the pool.
    HWp = pl.cdiv(HW, 128) * 128
    x = x_nchw.reshape(N, C, HW)
    if HWp != HW:
        x = jnp.pad(x, ((0, 0), (0, 0), (0, HWp - HW)))
    inv_hw = float(1.0 / HW)

    weight_bytes = 2 * 4 * (2 * Cr * C + Cr + C)   # double-buffered weights+biases
    slack = 2 << 20
    cap = _vmem_capacity_bytes()
    budget = max(cap - (8 << 20), 16 << 20)        # leave compiler headroom

    per_n_bytes = C * HWp * itemsize               # one batch element, one buffer
    single_pass_fits = (4 * per_n_bytes + weight_bytes + slack) <= budget

    if single_pass_fits and not force_two_phase:
        # ------------- single pass: 1 HBM read + 1 HBM write -------------------
        # Pack several batch elements per grid step so per-step overhead is
        # amortized and the MXU RHS has Nb columns instead of 1.
        nb_budget = (budget - weight_bytes - slack) // (4 * per_n_bytes)
        nb_cap = max(1, (8 << 20) // per_n_bytes)  # keep blocks a few MiB
        Nb = int(max(1, min(N, nb_budget, nb_cap)))
        n_steps = pl.cdiv(N, Nb)

        needed = 4 * Nb * per_n_bytes + weight_bytes + slack
        kernel = functools.partial(_calayer_fused_kernel, inv_hw=inv_hw)
        out = pl.pallas_call(
            kernel,
            out_shape=jax.ShapeDtypeStruct((N, C, HWp), dtype),
            grid=(n_steps,),
            in_specs=[
                pl.BlockSpec((Nb, C, HWp), lambda n: (n, 0, 0)),
                pl.BlockSpec((C, Cr), lambda n: (0, 0)),
                pl.BlockSpec((1, Cr), lambda n: (0, 0)),
                pl.BlockSpec((Cr, C), lambda n: (0, 0)),
                pl.BlockSpec((1, C), lambda n: (0, 0)),
            ],
            out_specs=pl.BlockSpec((Nb, C, HWp), lambda n: (n, 0, 0)),
            compiler_params=pltpu.CompilerParams(
                dimension_semantics=("parallel",),
                vmem_limit_bytes=int(min(cap, max(needed, 16 << 20))),
            ),
        )(x, w1.T, b1.reshape(1, Cr), w2.T, b2.reshape(1, C))
    else:
        # ------------- two-phase fallback: 2 HBM reads + 1 write ---------------
        # Feature map too large to keep resident (e.g. v7x's 64 MiB VMEM).
        # Phase A: pool + squeeze/excite per HW tile (reduction axis last,
        # output-resident gate). Phase B: apply the gate per tile, fully
        # parallel so both v7x TensorCores work even when N == 1.
        units_total = HWp // 128
        tile_budget_units = max(
            1, (budget - weight_bytes - slack) // (4 * C * itemsize * 128))
        units = max(1, min(units_total, tile_budget_units))
        while units_total % units != 0:   # tiles must divide HWp exactly so no
            units -= 1                    # out-of-bounds lanes enter the pool
        tile_hw = units * 128
        if tile_hw_override is not None:
            assert tile_hw_override % 128 == 0 and HWp % tile_hw_override == 0
            tile_hw = tile_hw_override
        n_tiles = HWp // tile_hw

        tile_bytes = C * tile_hw * itemsize
        needed_a = 2 * tile_bytes + weight_bytes + 8 * C * 4 + slack
        needed_b = 4 * tile_bytes + 4 * C * 4 + slack

        pool_kernel = functools.partial(_pool_excite_kernel, inv_hw=inv_hw)
        gates = pl.pallas_call(
            pool_kernel,
            out_shape=jax.ShapeDtypeStruct((N, C, 1), jnp.float32),
            grid=(N, n_tiles),
            in_specs=[
                pl.BlockSpec((1, C, tile_hw), lambda n, t: (n, 0, t)),
                pl.BlockSpec((Cr, C), lambda n, t: (0, 0)),
                pl.BlockSpec((Cr, 1), lambda n, t: (0, 0)),
                pl.BlockSpec((C, Cr), lambda n, t: (0, 0)),
                pl.BlockSpec((C, 1), lambda n, t: (0, 0)),
            ],
            out_specs=pl.BlockSpec((1, C, 1), lambda n, t: (n, 0, 0)),
            scratch_shapes=[pltpu.VMEM((C, 1), jnp.float32)],
            compiler_params=pltpu.CompilerParams(
                dimension_semantics=("parallel", "arbitrary"),
                vmem_limit_bytes=int(min(cap, max(needed_a, 16 << 20))),
            ),
        )(x, w1, b1.reshape(Cr, 1), w2, b2.reshape(C, 1))

        out = pl.pallas_call(
            _apply_gate_kernel,
            out_shape=jax.ShapeDtypeStruct((N, C, HWp), dtype),
            grid=(N, n_tiles),
            in_specs=[
                pl.BlockSpec((1, C, tile_hw), lambda n, t: (n, 0, t)),
                pl.BlockSpec((1, C, 1), lambda n, t: (n, 0, 0)),
            ],
            out_specs=pl.BlockSpec((1, C, tile_hw), lambda n, t: (n, 0, t)),
            compiler_params=pltpu.CompilerParams(
                dimension_semantics=("parallel", "parallel"),
                vmem_limit_bytes=int(min(cap, max(needed_b, 16 << 20))),
            ),
        )(x, gates)

    if HWp != HW:
        out = out[:, :, :HW]
    return out.reshape(N, C, H, W)


# -----------------------------------------------------------------------------
# Reference, init, test
# -----------------------------------------------------------------------------

def _calayer_reference(x, w1, b1, w2, b2):
    """Pure-JAX reference mirroring PyTorch CALayer.forward (NCHW)."""
    pool = jnp.mean(x, axis=(2, 3), keepdims=True)                         # (N,C,1,1)
    h = jnp.einsum("rc,ncij->nrij", w1, pool) + b1[None, :, None, None]
    h = jnp.maximum(h, 0.0)
    g = jnp.einsum("cr,nrij->ncij", w2, h) + b2[None, :, None, None]
    g = jax.nn.sigmoid(g)
    return x * g


def init_calayer_params(key, channel):
    """PyTorch-default-style uniform(+-1/sqrt(fan_in)) init for the two 1x1 convs."""
    cr = channel // 8
    k1w, k1b, k2w, k2b = jax.random.split(key, 4)
    bound1 = 1.0 / jnp.sqrt(channel)     # fan_in of conv1 = channel * 1 * 1
    bound2 = 1.0 / jnp.sqrt(cr)          # fan_in of conv2 = channel//8 * 1 * 1
    w1 = jax.random.uniform(k1w, (cr, channel), minval=-bound1, maxval=bound1,
                            dtype=jnp.float32)
    b1 = jax.random.uniform(k1b, (cr,), minval=-bound1, maxval=bound1,
                            dtype=jnp.float32)
    w2 = jax.random.uniform(k2w, (channel, cr), minval=-bound2, maxval=bound2,
                            dtype=jnp.float32)
    b2 = jax.random.uniform(k2b, (channel,), minval=-bound2, maxval=bound2,
                            dtype=jnp.float32)
    return w1, b1, w2, b2


if __name__ == "__main__":
    key = jax.random.PRNGKey(0)
    # channel must be >= 8 because the module uses channel // 8 for the squeeze.
    N, C, H, W = 2, 32, 16, 16

    kx, kp, kx2 = jax.random.split(key, 3)
    x = jax.random.normal(kx, (N, C, H, W), dtype=jnp.float32)   # NCHW, like PyTorch
    w1, b1, w2, b2 = init_calayer_params(kp, C)
    ref = _calayer_reference(x, w1, b1, w2, b2)

    # Single-pass (fused) path.
    fwd = jax.jit(calayer_forward)
    out = fwd(x, w1, b1, w2, b2)
    jax.block_until_ready(out)
    assert out.shape == (N, C, H, W), out.shape
    assert jnp.allclose(out, ref, atol=1e-4, rtol=1e-4), float(
        jnp.max(jnp.abs(out - ref)))

    # Two-phase (tiled) fallback path, forced so it is exercised at small shapes.
    fwd2 = jax.jit(functools.partial(calayer_forward, force_two_phase=True,
                                     tile_hw_override=128))
    out2 = fwd2(x, w1, b1, w2, b2)
    jax.block_until_ready(out2)
    assert jnp.allclose(out2, ref, atol=1e-4, rtol=1e-4), float(
        jnp.max(jnp.abs(out2 - ref)))

    # Non-multiple-of-128 spatial size exercises the lane-padding path.
    Hs, Ws = 11, 13
    xs = jax.random.normal(kx2, (N, C, Hs, Ws), dtype=jnp.float32)
    outs = jax.jit(calayer_forward)(xs, w1, b1, w2, b2)
    jax.block_until_ready(outs)
    refs = _calayer_reference(xs, w1, b1, w2, b2)
    assert jnp.allclose(outs, refs, atol=1e-4, rtol=1e-4), float(
        jnp.max(jnp.abs(outs - refs)))

    print("KERNEL_OK")
</pallas_src>

<mosaic_0001>
module attributes {stable_mosaic.version = 11 : i64} {
  func.func @_calayer_fused_kernel(%arg0: i32, %arg1: memref<2x32x256xf32, #tpu.memory_space<vmem>>, %arg2: memref<32x4xf32, #tpu.memory_space<vmem>>, %arg3: memref<1x4xf32, #tpu.memory_space<vmem>>, %arg4: memref<4x32xf32, #tpu.memory_space<vmem>>, %arg5: memref<1x32xf32, #tpu.memory_space<vmem>>, %arg6: memref<2x32x256xf32, #tpu.memory_space<vmem>>) attributes {dimension_semantics = [#tpu.dimension_semantics<parallel>], iteration_bounds = array<i64: 1>, scalar_prefetch = 0 : i64, scratch_operands = 0 : i64, tpu.core_type = #tpu.core_type<tc>, window_params = [{transform_indices = @transform_0, window_bounds = array<i64: 2, 32, 256>}, {pipeline_mode = #tpu.pipeline_mode<synchronous>, transform_indices = @transform_1, window_bounds = array<i64: 32, 4>}, {pipeline_mode = #tpu.pipeline_mode<synchronous>, transform_indices = @transform_2, window_bounds = array<i64: 1, 4>}, {pipeline_mode = #tpu.pipeline_mode<synchronous>, transform_indices = @transform_3, window_bounds = array<i64: 4, 32>}, {pipeline_mode = #tpu.pipeline_mode<synchronous>, transform_indices = @transform_4, window_bounds = array<i64: 1, 32>}, {transform_indices = @transform_5, window_bounds = array<i64: 2, 32, 256>}]} {
    %c0 = arith.constant 0 : index
    %c0_0 = arith.constant 0 : index
    %c0_1 = arith.constant 0 : index
    %0 = vector.load %arg1[%c0, %c0_0, %c0_1] : memref<2x32x256xf32, #tpu.memory_space<vmem>>, vector<2x32x256xf32>
    %cst = arith.constant dense<0.000000e+00> : vector<2x32xf32>
    %1 = vector.multi_reduction <add>, %0, %cst [2] : vector<2x32x256xf32> to vector<2x32xf32>
    %cst_2 = arith.constant 3.906250e-03 : f32
    %2 = vector.broadcast %cst_2 : f32 to vector<2x32xf32>
    %3 = arith.mulf %1, %2 : vector<2x32xf32>
    %c0_3 = arith.constant 0 : index
    %c0_4 = arith.constant 0 : index
    %4 = vector.load %arg2[%c0_3, %c0_4] : memref<32x4xf32, #tpu.memory_space<vmem>>, vector<32x4xf32>
    %cst_5 = arith.constant dense<0.000000e+00> : vector<2x4xf32>
    %5 = tpu.matmul %3, %4, %cst_5 {dimension_numbers = #tpu.dot_dimension_numbers<[1], [0], [0], [1], [0, 0, 1, 1], [], []>} : vector<2x32xf32>, vector<32x4xf32>, vector<2x4xf32> -> vector<2x4xf32>
    %c0_6 = arith.constant 0 : index
    %c0_7 = arith.constant 0 : index
    %6 = vector.load %arg3[%c0_6, %c0_7] : memref<1x4xf32, #tpu.memory_space<vmem>>, vector<1x4xf32>
    %7 = vector.broadcast %6 : vector<1x4xf32> to vector<2x4xf32>
    %8 = arith.addf %5, %7 : vector<2x4xf32>
    %cst_8 = arith.constant 0.000000e+00 : f32
    %9 = vector.broadcast %cst_8 : f32 to vector<2x4xf32>
    %10 = arith.maximumf %8, %9 : vector<2x4xf32>
    %c0_9 = arith.constant 0 : index
    %c0_10 = arith.constant 0 : index
    %11 = vector.load %arg4[%c0_9, %c0_10] : memref<4x32xf32, #tpu.memory_space<vmem>>, vector<4x32xf32>
    %cst_11 = arith.constant dense<0.000000e+00> : vector<2x32xf32>
    %12 = tpu.matmul %10, %11, %cst_11 {dimension_numbers = #tpu.dot_dimension_numbers<[1], [0], [0], [1], [0, 0, 1, 1], [], []>} : vector<2x4xf32>, vector<4x32xf32>, vector<2x32xf32> -> vector<2x32xf32>
    %c0_12 = arith.constant 0 : index
    %c0_13 = arith.constant 0 : index
    %13 = vector.load %arg5[%c0_12, %c0_13] : memref<1x32xf32, #tpu.memory_space<vmem>>, vector<1x32xf32>
    %14 = vector.broadcast %13 : vector<1x32xf32> to vector<2x32xf32>
    %15 = arith.addf %12, %14 : vector<2x32xf32>
    %cst_14 = arith.constant 0.000000e+00 : f32
    %16 = vector.broadcast %cst_14 : f32 to vector<2x32xf32>
    %17 = arith.subf %16, %15 : vector<2x32xf32>
    %18 = math.exp %17 : vector<2x32xf32>
    %cst_15 = arith.constant 1.000000e+00 : f32
    %19 = vector.broadcast %cst_15 : f32 to vector<2x32xf32>
    %20 = arith.addf %19, %18 : vector<2x32xf32>
    %cst_16 = arith.constant 1.000000e+00 : f32
    %21 = vector.broadcast %cst_16 : f32 to vector<2x32xf32>
    %22 = arith.divf %21, %20 : vector<2x32xf32>
    %c0_17 = arith.constant 0 : index
    %c0_18 = arith.constant 0 : index
    %c0_19 = arith.constant 0 : index
    %23 = vector.load %arg1[%c0_17, %c0_18, %c0_19] : memref<2x32x256xf32, #tpu.memory_space<vmem>>, vector<2x32x256xf32>
    %24 = vector.shape_cast %22 : vector<2x32xf32> to vector<2x32x1xf32>
    %25 = vector.broadcast %24 : vector<2x32x1xf32> to vector<2x32x256xf32>
    %26 = arith.mulf %23, %25 : vector<2x32x256xf32>
    %c0_20 = arith.constant 0 : index
    %c0_21 = arith.constant 0 : index
    %c0_22 = arith.constant 0 : index
    %27 = vector.load %arg6[%c0_20, %c0_21, %c0_22] : memref<2x32x256xf32, #tpu.memory_space<vmem>>, vector<2x32x256xf32>
    tpu.vector_store %arg6[%c0_20, %c0_21, %c0_22], %26 {strides = array<i32>} : memref<2x32x256xf32, #tpu.memory_space<vmem>>, vector<2x32x256xf32>,
    return
  }
  func.func @transform_0(%arg0: i32) -> (i32, i32, i32) {
    %c0_i32 = arith.constant 0 : i32
    %c0_i32_0 = arith.constant 0 : i32
    %c0_i32_1 = arith.constant 0 : i32
    return %arg0, %c0_i32, %c0_i32_0 : i32, i32, i32
  }
  func.func @transform_1(%arg0: i32) -> (i32, i32) {
    %c0_i32 = arith.constant 0 : i32
    %c0_i32_0 = arith.constant 0 : i32
    %c0_i32_1 = arith.constant 0 : i32
    return %c0_i32, %c0_i32_0 : i32, i32
  }
  func.func @transform_2(%arg0: i32) -> (i32, i32) {
    %c0_i32 = arith.constant 0 : i32
    %c0_i32_0 = arith.constant 0 : i32
    %c0_i32_1 = arith.constant 0 : i32
    return %c0_i32, %c0_i32_0 : i32, i32
  }
  func.func @transform_3(%arg0: i32) -> (i32, i32) {
    %c0_i32 = arith.constant 0 : i32
    %c0_i32_0 = arith.constant 0 : i32
    %c0_i32_1 = arith.constant 0 : i32
    return %c0_i32, %c0_i32_0 : i32, i32
  }
  func.func @transform_4(%arg0: i32) -> (i32, i32) {
    %c0_i32 = arith.constant 0 : i32
    %c0_i32_0 = arith.constant 0 : i32
    %c0_i32_1 = arith.constant 0 : i32
    return %c0_i32, %c0_i32_0 : i32, i32
  }
  func.func @transform_5(%arg0: i32) -> (i32, i32, i32) {
    %c0_i32 = arith.constant 0 : i32
    %c0_i32_0 = arith.constant 0 : i32
    %c0_i32_1 = arith.constant 0 : i32
    return %arg0, %c0_i32, %c0_i32_0 : i32, i32, i32
  }
}

</mosaic_0001>

<llo_original>
// kernel: calayer_forward.1
$region0: #{calayer_forward.1}
  #allocation0 [shape = 'u32[]', space=smem, size = 0x4, offset = 0x4, fixed_abs, tag = 'smem constant byte address 0x4 - core index']
  #allocation1 [shape = 'u32[144,128]{1,0:T(1,128)}', space=vmem, size = 0x12000, scoped, tag = 'internal scratch']
  %s0 = inlined_call_operand.vmem [shape: f32[2,32,256], index: 0, kind: input, shape index: {}]
  %s1 = inlined_call_operand.vmem [shape: f32[32,4], index: 1, kind: input, shape index: {}]
  %s2 = inlined_call_operand.vmem [shape: f32[1,4], index: 2, kind: input, shape index: {}]
  %s3 = inlined_call_operand.vmem [shape: f32[4,32], index: 3, kind: input, shape index: {}]
  %s4 = inlined_call_operand.vmem [shape: f32[1,32], index: 4, kind: input, shape index: {}]
  %s5 = inlined_call_operand.vmem [shape: f32[2,32,256], index: 5, kind: output, shape index: {}]
  %s6 = sld [smem:[#allocation0]]
  $region30: #{calayer_forward.1} parent=0
    _
  %s8 = ssub.s32 1, %s6
  %s9 = scalar_select 0, %s8, %s6
  // Predicated region
  $region2: #{calayer_forward.1} parent=0 // pred_check
    _
  $region3: #{calayer_forward.1} parent=0 // pred_check_branch
    %11 = sbr.rel (0) target = $region5
  $region4: #{calayer_forward.1} parent=0 // pred_region
    _
  $region5: #{calayer_forward.1} parent=0 // pred_fallthru
    _
  // Predicated region
  $region6: #{calayer_forward.1} parent=0 // pred_check
    _
  $region7: #{calayer_forward.1} parent=0 // pred_check_branch
    %13 = sbr.rel (0) target = $region9
  $region8: #{calayer_forward.1} parent=0 // pred_region
    _
  $region9: #{calayer_forward.1} parent=0 // pred_fallthru
    _
  // Predicated region
  $region10: #{calayer_forward.1} parent=0 // pred_check
    _
  $region11: #{calayer_forward.1} parent=0 // pred_check_branch
    %15 = sbr.rel (0) target = $region13
  $region12: #{calayer_forward.1} parent=0 // pred_region
    _
  $region13: #{calayer_forward.1} parent=0 // pred_fallthru
    _
  // Predicated region
  $region14: #{calayer_forward.1} parent=0 // pred_check
    _
  $region15: #{calayer_forward.1} parent=0 // pred_check_branch
    %17 = sbr.rel (0) target = $region17
  $region16: #{calayer_forward.1} parent=0 // pred_region
    _
  $region17: #{calayer_forward.1} parent=0 // pred_fallthru
    _
  // Predicated region
  $region18: #{calayer_forward.1} parent=0 // pred_check
    _
  $region19: #{calayer_forward.1} parent=0 // pred_check_branch
    %19 = sbr.rel (0) target = $region21
  $region20: #{calayer_forward.1} parent=0 // pred_region
    _
  $region21: #{calayer_forward.1} parent=0 // pred_fallthru
    _
  %v20 = vld [vmem:[%s0] sm:$0xff]
  %v21 = vld [vmem:[%s0 + $0x8] sm:$0xff]
  %v22 = vld [vmem:[%s0 + $0x10] sm:$0xff]
  %v23 = vld [vmem:[%s0 + $0x18] sm:$0xff]
  %v24 = vld [vmem:[%s0 + $0x20] sm:$0xff]
  %v25 = vld [vmem:[%s0 + $0x28] sm:$0xff]
  %v26 = vld [vmem:[%s0 + $0x30] sm:$0xff]
  %v27 = vld [vmem:[%s0 + $0x38] sm:$0xff]
  %v28 = vld [vmem:[%s0 + $0x40] sm:$0xff]
  %v29 = vld [vmem:[%s0 + $0x48] sm:$0xff]
  %v30 = vld [vmem:[%s0 + $0x50] sm:$0xff]
  %v31 = vld [vmem:[%s0 + $0x58] sm:$0xff]
  %v32 = vld [vmem:[%s0 + $0x60] sm:$0xff]
  %v33 = vld [vmem:[%s0 + $0x68] sm:$0xff]
  %v34 = vld [vmem:[%s0 + $0x70] sm:$0xff]
  %v35 = vld [vmem:[%s0 + $0x78] sm:$0xff]
  %v36 = vadd.f32 %v20, %v21
  %37 = vadd.xlane.f32.xlu0 %v36
  %v38 = vpop.xlane.xlu0 %37
  %v39 = vadd.f32 %v22, %v23
  %40 = vadd.xlane.f32.xlu0 %v39
  %v41 = vpop.xlane.xlu0 %40
  %v42 = vadd.f32 %v24, %v25
  %43 = vadd.xlane.f32.xlu0 %v42
  %v44 = vpop.xlane.xlu0 %43
  %v45 = vadd.f32 %v26, %v27
  %46 = vadd.xlane.f32.xlu0 %v45
  %v47 = vpop.xlane.xlu0 %46
  %v48 = vadd.f32 %v28, %v29
  %49 = vadd.xlane.f32.xlu0 %v48
  %v50 = vpop.xlane.xlu0 %49
  %v51 = vadd.f32 %v30, %v31
  %52 = vadd.xlane.f32.xlu0 %v51
  %v53 = vpop.xlane.xlu0 %52
  %v54 = vadd.f32 %v32, %v33
  %55 = vadd.xlane.f32.xlu0 %v54
  %v56 = vpop.xlane.xlu0 %55
  %v57 = vadd.f32 %v34, %v35
  %58 = vadd.xlane.f32.xlu0 %v57
  %v59 = vpop.xlane.xlu0 %58
  %v60 = vmul.f32 %v38, 0.00390625
  %v61 = vmul.f32 %v41, 0.00390625
  %v62 = vmul.f32 %v44, 0.00390625
  %v63 = vmul.f32 %v47, 0.00390625
  %v64 = vmul.f32 %v50, 0.00390625
  %v65 = vmul.f32 %v53, 0.00390625
  %v66 = vmul.f32 %v56, 0.00390625
  %v67 = vmul.f32 %v59, 0.00390625
  %v68 = vld [vmem:[%s1] sm:$0xff]
  %v69 = vld [vmem:[%s1 + $0x8] sm:$0xff]
  %v70 = vld [vmem:[%s1 + $0x10] sm:$0xff]
  %v71 = vld [vmem:[%s1 + $0x18] sm:$0xff]
  %v72 = vld [vmem:[%s2] sm:$0x1]
  %v74 = vlaneseq
  %v75 = vshrl.u32 %v74, 7
  %v76 = vsub.s32 0, %v75
  %v77 = vrot.slane %v72, %v76
  %v87 = vlaneseq
  %v88 = vand.u32 %v87, 127
  %v89 = vlaneseq
  %v90 = vshrl.u32 %v89, 7
  %v91 = vsub.s32 %v88, %v90
  %v92 = vrot.slane %v60, %v91
  %v93 = vadd.s32 %v88, 4294967288
  %v94 = vlaneseq
  %v95 = vshrl.u32 %v94, 7
  %v96 = vsub.s32 %v93, %v95
  %v97 = vrot.slane %v61, %v96
  %vm98 = vcmask 130112
  %v99 = vsel %vm98, %v97, %v92
  %v100 = vadd.s32 %v88, 4294967280
  %v101 = vlaneseq
  %v102 = vshrl.u32 %v101, 7
  %v103 = vsub.s32 %v100, %v102
  %v104 = vrot.slane %v62, %v103
  %vm105 = vcmask 195712
  %v106 = vsel %vm105, %v104, %v99
  %v107 = vadd.s32 %v88, 4294967272
  %v108 = vlaneseq
  %v109 = vshrl.u32 %v108, 7
  %v110 = vsub.s32 %v107, %v109
  %v111 = vrot.slane %v63, %v110
  %vm112 = vcmask 261312
  %v113 = vsel %vm112, %v111, %v106
  %v114 = vlaneseq
  %v115 = vshrl.u32 %v114, 7
  %v116 = vsub.s32 %v88, %v115
  %v117 = vrot.slane %v64, %v116
  %v118 = vlaneseq
  %v119 = vshrl.u32 %v118, 7
  %v120 = vsub.s32 %v93, %v119
  %v121 = vrot.slane %v65, %v120
  %v122 = vsel %vm98, %v121, %v117
  %v123 = vlaneseq
  %v124 = vshrl.u32 %v123, 7
  %v125 = vsub.s32 %v100, %v124
  %v126 = vrot.slane %v66, %v125
  %v127 = vsel %vm105, %v126, %v122
  %v128 = vlaneseq
  %v129 = vshrl.u32 %v128, 7
  %v130 = vsub.s32 %v107, %v129
  %v131 = vrot.slane %v67, %v130
  %v132 = vsel %vm112, %v131, %v127
  %vm133 = vcmask 1041409
  %v134 = vsel %vm133, %v132, %v113
  %vm135 = vcmask 261120
  %v136 = vsel %vm135, %v134, 0
  %138 = vmatprep.subr.mxu0 0.0
  %139 = vmatpush1.msra.mxu0 0.0
  %140 = vmatprep.subr.mxu0 0.0
  %141 = vmatpush1.msra.mxu0 0.0
  %142 = vmatprep.subr.mxu0 0.0
  %143 = vmatpush1.msra.mxu0 0.0
  %144 = vmatprep.subr.mxu0 0.0
  %145 = vmatpush1.msra.mxu0 0.0
  %146 = vmatprep.subr.mxu0 0.0
  %147 = vmatpush1.msra.mxu0 0.0
  %148 = vmatprep.subr.mxu0 0.0
  %149 = vmatpush1.msra.mxu0 0.0
  %150 = vmatprep.subr.mxu0 0.0
  %151 = vmatpush1.msra.mxu0 0.0
  %152 = vmatprep.subr.mxu0 0.0
  %153 = vmatpush1.msra.mxu0 0.0
  %154 = vmatprep.subr.mxu0 0.0
  %155 = vmatpush1.msra.mxu0 0.0
  %156 = vmatprep.subr.mxu0 0.0
  %157 = vmatpush1.msra.mxu0 0.0
  %158 = vmatprep.subr.mxu0 0.0
  %159 = vmatpush1.msra.mxu0 0.0
  %160 = vmatprep.subr.mxu0 0.0
  %161 = vmatpush1.msra.mxu0 0.0
  %162 = vmatprep.subr.mxu0 0.0
  %163 = vmatpush1.msra.mxu0 %v71
  %164 = vmatprep.subr.mxu0 0.0
  %165 = vmatpush1.msra.mxu0 %v70
  %166 = vmatprep.subr.mxu0 0.0
  %167 = vmatpush1.msra.mxu0 %v69
  %168 = vmatprep.subr.mxu0 0.0
  %169 = vmatpush1.msra.mxu0 %v68
  %170 = vmatprep.subr.mxu0 0.0
  %171 = vmatpush2.msra.mxu0 0.0
  %172 = vmatprep.subr.mxu0 0.0
  %173 = vmatpush2.msra.mxu0 0.0
  %174 = vmatprep.subr.mxu0 0.0
  %175 = vmatpush2.msra.mxu0 0.0
  %176 = vmatprep.subr.mxu0 0.0
  %177 = vmatpush2.msra.mxu0 0.0
  %178 = vmatprep.subr.mxu0 0.0
  %179 = vmatpush2.msra.mxu0 0.0
  %180 = vmatprep.subr.mxu0 0.0
  %181 = vmatpush2.msra.mxu0 0.0
  %182 = vmatprep.subr.mxu0 0.0
  %183 = vmatpush2.msra.mxu0 0.0
  %184 = vmatprep.subr.mxu0 0.0
  %185 = vmatpush2.msra.mxu0 0.0
  %186 = vmatprep.subr.mxu0 0.0
  %187 = vmatpush2.msra.mxu0 0.0
  %188 = vmatprep.subr.mxu0 0.0
  %189 = vmatpush2.msra.mxu0 0.0
  %190 = vmatprep.subr.mxu0 0.0
  %191 = vmatpush2.msra.mxu0 0.0
  %192 = vmatprep.subr.mxu0 0.0
  %193 = vmatpush2.msra.mxu0 0.0
  %194 = vmatprep.subr.mxu0 0.0
  %195 = vmatpush2.msra.mxu0 0.0
  %196 = vmatprep.subr.mxu0 0.0
  %197 = vmatpush2.msra.mxu0 0.0
  %198 = vmatprep.subr.mxu0 0.0
  %199 = vmatpush2.msra.mxu0 0.0
  %200 = vmatprep.subr.mxu0 0.0
  %201 = vmatpush2.msra.mxu0 0.0
  %202 = vmatprep.mubr.f32.mxu0 0.0
  %203 = vmatmul.mubr.f32.gmra.mxu0 %v136
  %v204 = vpop.f32.mrf.mxu0
  %v205 = vadd.f32 %v77, %v204
  %v206 = vpop.f32.mrf.mxu0
  %207 = vdwg.mxu0
  %v208 = vmax.f32 %v205, 0.0
  %v209 = vld [vmem:[%s3] sm:$0xf]
  %v210 = vld [vmem:[%s4] sm:$0x1]
  %v212 = vlaneseq
  %v213 = vshrl.u32 %v212, 7
  %v214 = vsub.s32 0, %v213
  %v215 = vrot.slane %v210, %v214
  %vm217 = vcmask 31744
  %v219 = vsel %vm217, %v208, 0
  %vm221 = vcmask 1043456
  %v223 = vsel %vm221, %v209, 0
  %225 = vmatprep.subr.mxu0 0.0
  %226 = vmatpush1.msra.mxu0 0.0
  %227 = vmatprep.subr.mxu0 0.0
  %228 = vmatpush1.msra.mxu0 0.0
  %229 = vmatprep.subr.mxu0 0.0
  %230 = vmatpush1.msra.mxu0 0.0
  %231 = vmatprep.subr.mxu0 0.0
  %232 = vmatpush1.msra.mxu0 0.0
  %233 = vmatprep.subr.mxu0 0.0
  %234 = vmatpush1.msra.mxu0 0.0
  %235 = vmatprep.subr.mxu0 0.0
  %236 = vmatpush1.msra.mxu0 0.0
  %237 = vmatprep.subr.mxu0 0.0
  %238 = vmatpush1.msra.mxu0 0.0
  %239 = vmatprep.subr.mxu0 0.0
  %240 = vmatpush1.msra.mxu0 0.0
  %241 = vmatprep.subr.mxu0 0.0
  %242 = vmatpush1.msra.mxu0 0.0
  %243 = vmatprep.subr.mxu0 0.0
  %244 = vmatpush1.msra.mxu0 0.0
  %245 = vmatprep.subr.mxu0 0.0
  %246 = vmatpush1.msra.mxu0 0.0
  %247 = vmatprep.subr.mxu0 0.0
  %248 = vmatpush1.msra.mxu0 0.0
  %249 = vmatprep.subr.mxu0 0.0
  %250 = vmatpush1.msra.mxu0 0.0
  %251 = vmatprep.subr.mxu0 0.0
  %252 = vmatpush1.msra.mxu0 0.0
  %253 = vmatprep.subr.mxu0 0.0
  %254 = vmatpush1.msra.mxu0 0.0
  %255 = vmatprep.subr.mxu0 0.0
  %256 = vmatpush1.msra.mxu0 %v223
  %257 = vmatprep.subr.mxu0 0.0
  %258 = vmatpush2.msra.mxu0 0.0
  %259 = vmatprep.subr.mxu0 0.0
  %260 = vmatpush2.msra.mxu0 0.0
  %261 = vmatprep.subr.mxu0 0.0
  %262 = vmatpush2.msra.mxu0 0.0
  %263 = vmatprep.subr.mxu0 0.0
  %264 = vmatpush2.msra.mxu0 0.0
  %265 = vmatprep.subr.mxu0 0.0
  %266 = vmatpush2.msra.mxu0 0.0
  %267 = vmatprep.subr.mxu0 0.0
  %268 = vmatpush2.msra.mxu0 0.0
  %269 = vmatprep.subr.mxu0 0.0
  %270 = vmatpush2.msra.mxu0 0.0
  %271 = vmatprep.subr.mxu0 0.0
  %272 = vmatpush2.msra.mxu0 0.0
  %273 = vmatprep.subr.mxu0 0.0
  %274 = vmatpush2.msra.mxu0 0.0
  %275 = vmatprep.subr.mxu0 0.0
  %276 = vmatpush2.msra.mxu0 0.0
  %277 = vmatprep.subr.mxu0 0.0
  %278 = vmatpush2.msra.mxu0 0.0
  %279 = vmatprep.subr.mxu0 0.0
  %280 = vmatpush2.msra.mxu0 0.0
  %281 = vmatprep.subr.mxu0 0.0
  %282 = vmatpush2.msra.mxu0 0.0
  %283 = vmatprep.subr.mxu0 0.0
  %284 = vmatpush2.msra.mxu0 0.0
  %285 = vmatprep.subr.mxu0 0.0
  %286 = vmatpush2.msra.mxu0 0.0
  %287 = vmatprep.subr.mxu0 0.0
  %288 = vmatpush2.msra.mxu0 0.0
  %289 = vmatprep.mubr.f32.mxu0 0.0
  %290 = vmatmul.mubr.f32.gmra.mxu0 %v219
  %v291 = vpop.f32.mrf.mxu0
  %v292 = vadd.f32 %v215, %v291
  %v293 = vpop.f32.mrf.mxu0
  %294 = vdwg.mxu0
  %v295 = vsub.f32 0.0, %v292
  %v296 = vmul.f32 %v295, 1.442695
  %v297 = vpow.pop %v296
  %v298 = vadd.f32 %v297, 1.0
  %v299 = vrcp.pop %v298
  %v300 = vmul.f32 1.0, %v299
  %v301 = vlaneseq
  %v302 = vshrl.u32 %v301, 7
  %v303 = vsub.s32 0, %v302
  %v304 = vrot.slane %v300, %v303
  %306 = vbcast.lane.b32.xlu0 %v304, 256
  %v307 = vpop.permute.xlu0 %306
  %s309 = sor.u32 256, 8
  %310 = vbcast.lane.b32.xlu0 %v304, %s309
  %v311 = vpop.permute.xlu0 %310
  %s313 = sor.u32 256, 16
  %314 = vbcast.lane.b32.xlu0 %v304, %s313
  %v315 = vpop.permute.xlu0 %314
  %s317 = sor.u32 256, 24
  %318 = vbcast.lane.b32.xlu0 %v304, %s317
  %v319 = vpop.permute.xlu0 %318
  %v320 = vlaneseq
  %v321 = vshrl.u32 %v320, 7
  %v322 = vsub.s32 1, %v321
  %v323 = vrot.slane %v300, %v322
  %325 = vbcast.lane.b32.xlu0 %v323, 256
  %v326 = vpop.permute.xlu0 %325
  %s328 = sor.u32 256, 8
  %329 = vbcast.lane.b32.xlu0 %v323, %s328
  %v330 = vpop.permute.xlu0 %329
  %s332 = sor.u32 256, 16
  %333 = vbcast.lane.b32.xlu0 %v323, %s332
  %v334 = vpop.permute.xlu0 %333
  %s336 = sor.u32 256, 24
  %337 = vbcast.lane.b32.xlu0 %v323, %s336
  %v338 = vpop.permute.xlu0 %337
  %v339 = vmul.f32 %v20, %v307
  %v340 = vmul.f32 %v21, %v307
  %v341 = vmul.f32 %v22, %v311
  %v342 = vmul.f32 %v23, %v311
  %v343 = vmul.f32 %v24, %v315
  %v344 = vmul.f32 %v25, %v315
  %v345 = vmul.f32 %v26, %v319
  %v346 = vmul.f32 %v27, %v319
  %v347 = vmul.f32 %v28, %v326
  %v348 = vmul.f32 %v29, %v326
  %v349 = vmul.f32 %v30, %v330
  %v350 = vmul.f32 %v31, %v330
  %v351 = vmul.f32 %v32, %v334
  %v352 = vmul.f32 %v33, %v334
  %v353 = vmul.f32 %v34, %v338
  %v354 = vmul.f32 %v35, %v338
  %355 = vst [vmem:[%s5] sm:$0xff] %v339
  %356 = vst [vmem:[%s5 + $0x8] sm:$0xff] %v340
  %357 = vst [vmem:[%s5 + $0x10] sm:$0xff] %v341
  %358 = vst [vmem:[%s5 + $0x18] sm:$0xff] %v342
  %359 = vst [vmem:[%s5 + $0x20] sm:$0xff] %v343
  %360 = vst [vmem:[%s5 + $0x28] sm:$0xff] %v344
  %361 = vst [vmem:[%s5 + $0x30] sm:$0xff] %v345
  %362 = vst [vmem:[%s5 + $0x38] sm:$0xff] %v346
  %363 = vst [vmem:[%s5 + $0x40] sm:$0xff] %v347
  %364 = vst [vmem:[%s5 + $0x48] sm:$0xff] %v348
  %365 = vst [vmem:[%s5 + $0x50] sm:$0xff] %v349
  %366 = vst [vmem:[%s5 + $0x58] sm:$0xff] %v350
  %367 = vst [vmem:[%s5 + $0x60] sm:$0xff] %v351
  %368 = vst [vmem:[%s5 + $0x68] sm:$0xff] %v352
  %369 = vst [vmem:[%s5 + $0x70] sm:$0xff] %v353
  %370 = vst [vmem:[%s5 + $0x78] sm:$0xff] %v354
  // Predicated region
  $region22: #{calayer_forward.1} parent=0 // pred_check
    _
  $region23: #{calayer_forward.1} parent=0 // pred_check_branch
    %372 = sbr.rel (0) target = $region25
  $region24: #{calayer_forward.1} parent=0 // pred_region
    _
  $region25: #{calayer_forward.1} parent=0 // pred_fallthru
    _
  // Predicated region
  $region26: #{calayer_forward.1} parent=0 // pred_check
    _
  $region27: #{calayer_forward.1} parent=0 // pred_check_branch
    %374 = sbr.rel (0) target = $region29
  $region28: #{calayer_forward.1} parent=0 // pred_region
    _
  $region29: #{calayer_forward.1} parent=0 // pred_fallthru
    _

</llo_original>
